<compile_context>
chip_gen: v5e
topology: v5e:2x2
jax: 0.10.0
libtpu: 0.0.40
codegen_flags: <defaults>
</compile_context>

<pallas_src>
import jax
import jax.numpy as jnp
from jax.experimental import pallas as pl
from jax.experimental.pallas import tpu as pltpu


def _attend(reps, w, b, mask, out_ref, attw_ref):
    """Shared body. reps: (bb,T,H) native dtype; w: (1,H) native dtype;
    b: f32 scalar (from SMEM); mask: (bb,T) or None."""
    bb, T, H = reps.shape

    # Linear(H -> 1) as an MXU contraction (batched 'bqd,bkd->bqk' with k=1),
    # f32 accumulation via preferred_element_type. reps is NOT upcast.
    w_b = jnp.broadcast_to(w[None, :, :], (bb, 1, H))                    # (bb,1,H)
    scores3 = jnp.einsum("bth,boh->bto", reps, w_b,
                         preferred_element_type=jnp.float32)             # (bb,T,1)

    # Lane-dense softmax over the sequence axis: work on (bb, T), T on lanes.
    scores = scores3[:, :, 0] + b                                        # (bb,T) f32
    if mask is not None:
        # Multiplicative masking, faithful to the PyTorch module (masked
        # positions still receive softmax weight — NOT additive -inf masking).
        scores = mask.astype(jnp.float32) * scores

    m = jnp.max(scores, axis=1, keepdims=True)                           # (bb,1)
    e = jnp.exp(scores - m)                                              # EUP, lane-dense
    denom = jnp.sum(e, axis=1, keepdims=True)                            # (bb,1)
    weights = e * pl.reciprocal(denom, approx=False)                     # (bb,T) f32

    # Weighted sum over the sequence axis, also on the MXU
    # (flash-style 'bqk,bkd->bqd' with q=1).
    w3 = weights[:, None, :].astype(reps.dtype)                          # (bb,1,T)
    attn = jnp.einsum("bot,bth->boh", w3, reps,
                      preferred_element_type=jnp.float32)                # (bb,1,H)

    out_ref[...] = attn[:, 0, :].astype(out_ref.dtype)                   # (bb,H)
    attw_ref[...] = weights.astype(attw_ref.dtype)                       # (bb,T)


def _masked_kernel(reps_ref, w_ref, b_ref, mask_ref, out_ref, attw_ref):
    _attend(reps_ref[...], w_ref[...], b_ref[0], mask_ref[...], out_ref, attw_ref)


def _unmasked_kernel(reps_ref, w_ref, b_ref, out_ref, attw_ref):
    _attend(reps_ref[...], w_ref[...], b_ref[0], None, out_ref, attw_ref)


def _vmem_capacity_bytes(default=64 << 20):
    """Per-core VMEM capacity; conservative 64 MiB (v7x) fallback."""
    try:
        info = pltpu.get_tpu_info()
        cap = getattr(info, "vmem_capacity_bytes", None)
        if cap:
            return int(cap)
    except Exception:
        pass
    return default


def _pick_batch_block(B, T, H, itemsize, vmem_cap):
    """Batch-tile size: ~1/8 of per-core VMEM worth of reps per block
    (8 MiB on v7x, 16 MiB on v5e/v6e), aligned to the dtype's sublane packing,
    with >= 2 grid steps when the batch allows it (pipelining / v7x megacore)."""
    per_row = max(1, T * H * itemsize)
    target = min(32 << 20, max(1 << 20, vmem_cap // 8))
    pack = {4: 8, 2: 16, 1: 32}.get(itemsize, 8)   # sublane packing per dtype

    bb = min(B, max(1, target // per_row))
    if bb >= B:
        bb = B
        if B >= 2 * pack:                          # >=2 steps so both v7x TCs get work
            bb = max(pack, ((B // 2) // pack) * pack)
    else:
        bb = max(pack, (bb // pack) * pack)        # keep 2nd-minor block dims 8-aligned
        bb = min(bb, B)
    # TODO(synk): a single row (T*H) that does not fit the VMEM budget would
    # need a T-tiled online-softmax variant; not needed at these sizes.
    return bb, pl.cdiv(B, bb)


def soft_attention(reps, weight, bias, mask=None):
    """reps: (B,T,H), weight: (H,) or (1,H), bias: scalar-like, mask: (B,T) or None.
    Returns (attn_out (B,H), attn_weights (B,T,1)) — matches the PyTorch module."""
    B, T, H = reps.shape
    w2 = jnp.asarray(weight).reshape(1, H).astype(reps.dtype)
    b1 = jnp.asarray(bias, dtype=jnp.float32).reshape(1,)

    itemsize = jnp.dtype(reps.dtype).itemsize
    vmem_cap = _vmem_capacity_bytes()
    bb, steps = _pick_batch_block(B, T, H, itemsize, vmem_cap)
    grid = (steps,)

    # VMEM budget: double-buffered reps/mask/output blocks + small f32
    # intermediates (reps itself is never upcast), capped under physical VMEM
    # (v7x has only 64 MiB per TensorCore).
    reps_block = bb * T * H * itemsize
    need = (2 * reps_block                       # reps double buffer
            + 2 * bb * T * itemsize              # mask double buffer
            + 2 * (bb * H + bb * T) * itemsize   # output double buffers
            + 8 * bb * T * 4 + 2 * bb * H * 4    # f32 softmax / accum intermediates
            + (4 << 20))                         # headroom
    vmem_limit = int(min(max(need, 32 << 20), vmem_cap * 7 // 8))

    has_mask = mask is not None
    flops = 4 * B * T * H + 6 * B * T
    bytes_accessed = ((B * T * H + B * H + B * T + (B * T if has_mask else 0))
                      * itemsize + H * itemsize + 4)
    cost = pl.CostEstimate(flops=flops, transcendentals=B * T,
                           bytes_accessed=bytes_accessed)

    common = dict(
        out_shape=(jax.ShapeDtypeStruct((B, H), reps.dtype),
                   jax.ShapeDtypeStruct((B, T), reps.dtype)),
        grid=grid,
        out_specs=(pl.BlockSpec((bb, H), lambda i: (i, 0)),
                   pl.BlockSpec((bb, T), lambda i: (i, 0))),
        compiler_params=pltpu.CompilerParams(
            dimension_semantics=("parallel",),   # independent batch axis (megacore)
            vmem_limit_bytes=vmem_limit),
        cost_estimate=cost,
    )

    reps_spec = pl.BlockSpec((bb, T, H), lambda i: (i, 0, 0))
    w_spec = pl.BlockSpec((1, H), lambda i: (0, 0))
    b_spec = pl.BlockSpec(memory_space=pltpu.MemorySpace.SMEM)   # scalar bias in SMEM

    if has_mask:
        mask_arr = jnp.asarray(mask).astype(reps.dtype)
        out, attw = pl.pallas_call(
            _masked_kernel,
            in_specs=[reps_spec, w_spec, b_spec,
                      pl.BlockSpec((bb, T), lambda i: (i, 0))],
            **common,
        )(reps, w2, b1, mask_arr)
    else:
        # mask=None specialization: no ones-(B,T) array materialized or DMA'd.
        out, attw = pl.pallas_call(
            _unmasked_kernel,
            in_specs=[reps_spec, w_spec, b_spec],
            **common,
        )(reps, w2, b1)

    return out, attw[:, :, None]


def soft_attention_ref(reps, weight, bias, mask=None):
    """Pure-JAX reference of the PyTorch forward (for correctness check)."""
    scores = jnp.einsum("bth,h->bt", reps, weight.reshape(-1)) + bias.reshape(())
    if mask is not None:
        scores = mask * scores
    weights = jax.nn.softmax(scores, axis=1)
    out = jnp.sum(reps * weights[:, :, None], axis=1)
    return out, weights[:, :, None]


if __name__ == "__main__":
    B, T, H = 2, 8, 32  # batch, seq, hidden

    key = jax.random.PRNGKey(0)
    k_reps, k_w, k_b, k_mask = jax.random.split(key, 4)

    reps = jax.random.normal(k_reps, (B, T, H), dtype=jnp.float32)
    # nn.Linear(hidden_size, 1) init: U(-1/sqrt(H), 1/sqrt(H)) for weight and bias
    bound = 1.0 / (H ** 0.5)
    weight = jax.random.uniform(k_w, (H,), minval=-bound, maxval=bound, dtype=jnp.float32)
    bias = jax.random.uniform(k_b, (1,), minval=-bound, maxval=bound, dtype=jnp.float32)
    # simple 0/1 padding mask (as the PyTorch call site would pass)
    mask = (jax.random.uniform(k_mask, (B, T)) > 0.2).astype(jnp.float32)

    attn_out, attn_weights = soft_attention(reps, weight, bias, mask)
    jax.block_until_ready((attn_out, attn_weights))

    ref_out, ref_w = soft_attention_ref(reps, weight, bias, mask)
    assert attn_out.shape == (B, H)
    assert attn_weights.shape == (B, T, 1)
    assert jnp.allclose(attn_out, ref_out, atol=1e-5, rtol=1e-5)
    assert jnp.allclose(attn_weights, ref_w, atol=1e-5, rtol=1e-5)

    # also exercise the mask=None specialization
    out2, w2 = soft_attention(reps, weight, bias, None)
    jax.block_until_ready((out2, w2))
    ref_out2, ref_w2 = soft_attention_ref(reps, weight, bias, None)
    assert jnp.allclose(out2, ref_out2, atol=1e-5, rtol=1e-5)
    assert jnp.allclose(w2, ref_w2, atol=1e-5, rtol=1e-5)

    print("KERNEL_OK")
</pallas_src>

<mosaic_0001>
module attributes {stable_mosaic.version = 11 : i64} {
  func.func @_masked_kernel(%arg0: i32, %arg1: memref<2x8x32xf32, #tpu.memory_space<vmem>>, %arg2: memref<1x32xf32, #tpu.memory_space<vmem>>, %arg3: memref<1xf32, #tpu.memory_space<smem>>, %arg4: memref<2x8xf32, #tpu.memory_space<vmem>>, %arg5: memref<2x32xf32, #tpu.memory_space<vmem>>, %arg6: memref<2x8xf32, #tpu.memory_space<vmem>>) attributes {dimension_semantics = [#tpu.dimension_semantics<parallel>], iteration_bounds = array<i64: 1>, scalar_prefetch = 0 : i64, scratch_operands = 0 : i64, tpu.core_type = #tpu.core_type<tc>, window_params = [{transform_indices = @transform_0, window_bounds = array<i64: 2, 8, 32>}, {pipeline_mode = #tpu.pipeline_mode<synchronous>, transform_indices = @transform_1, window_bounds = array<i64: 1, 32>}, {transform_indices = @transform_2, window_bounds = array<i64: 1>}, {transform_indices = @transform_3, window_bounds = array<i64: 2, 8>}, {transform_indices = @transform_4, window_bounds = array<i64: 2, 32>}, {transform_indices = @transform_5, window_bounds = array<i64: 2, 8>}]} {
    %c0 = arith.constant 0 : index
    %c0_0 = arith.constant 0 : index
    %c0_1 = arith.constant 0 : index
    %0 = vector.load %arg1[%c0, %c0_0, %c0_1] : memref<2x8x32xf32, #tpu.memory_space<vmem>>, vector<2x8x32xf32>
    %c0_2 = arith.constant 0 : index
    %c0_3 = arith.constant 0 : index
    %1 = vector.load %arg2[%c0_2, %c0_3] : memref<1x32xf32, #tpu.memory_space<vmem>>, vector<1x32xf32>
    %c0_4 = arith.constant 0 : index
    %2 = memref.load %arg3[%c0_4] : memref<1xf32, #tpu.memory_space<smem>>
    %c0_5 = arith.constant 0 : index
    %c0_6 = arith.constant 0 : index
    %3 = vector.load %arg4[%c0_5, %c0_6] : memref<2x8xf32, #tpu.memory_space<vmem>>, vector<2x8xf32>
    %4 = vector.shape_cast %1 : vector<1x32xf32> to vector<1x1x32xf32>
    %5 = vector.shape_cast %4 : vector<1x1x32xf32> to vector<1x1x32xf32>
    %6 = vector.broadcast %5 : vector<1x1x32xf32> to vector<2x1x32xf32>
    "tpu.trace_start"() <{level = 10 : i32, message = "bth,boh->bto"}> : () -> ()
    %cst = arith.constant dense<0.000000e+00> : vector<2x8x1xf32>
    %7 = tpu.matmul %0, %6, %cst {dimension_numbers = #tpu.dot_dimension_numbers<[2], [2], [1], [1], [0, 0, 0, 1, 1, 1], [0], [0]>} : vector<2x8x32xf32>, vector<2x1x32xf32>, vector<2x8x1xf32> -> vector<2x8x1xf32>
    "tpu.trace_stop"() : () -> ()
    %8 = vector.shape_cast %7 : vector<2x8x1xf32> to vector<2x8xf32>
    %9 = vector.broadcast %2 : f32 to vector<2x8xf32>
    %10 = arith.addf %8, %9 : vector<2x8xf32>
    %11 = arith.mulf %3, %10 : vector<2x8xf32>
    %cst_7 = arith.constant dense<0xFF800000> : vector<2xf32>
    %12 = vector.multi_reduction <maximumf>, %11, %cst_7 [1] : vector<2x8xf32> to vector<2xf32>
    %13 = vector.shape_cast %12 : vector<2xf32> to vector<2x1xf32>
    %14 = vector.broadcast %13 : vector<2x1xf32> to vector<2x8xf32>
    %15 = arith.subf %11, %14 : vector<2x8xf32>
    %16 = math.exp %15 : vector<2x8xf32>
    %cst_8 = arith.constant dense<0.000000e+00> : vector<2xf32>
    %17 = vector.multi_reduction <add>, %16, %cst_8 [1] : vector<2x8xf32> to vector<2xf32>
    %18 = vector.shape_cast %17 : vector<2xf32> to vector<2x1xf32>
    %19 = tpu.reciprocal %18 : vector<2x1xf32> -> vector<2x1xf32>
    %20 = vector.broadcast %19 : vector<2x1xf32> to vector<2x8xf32>
    %21 = arith.mulf %16, %20 : vector<2x8xf32>
    %22 = vector.shape_cast %21 : vector<2x8xf32> to vector<2x1x8xf32>
    "tpu.trace_start"() <{level = 10 : i32, message = "bot,bth->boh"}> : () -> ()
    %cst_9 = arith.constant dense<0.000000e+00> : vector<2x1x32xf32>
    %23 = tpu.matmul %22, %0, %cst_9 {dimension_numbers = #tpu.dot_dimension_numbers<[2], [1], [1], [2], [0, 0, 0, 1, 1, 2], [0], [0]>} : vector<2x1x8xf32>, vector<2x8x32xf32>, vector<2x1x32xf32> -> vector<2x1x32xf32>
    "tpu.trace_stop"() : () -> ()
    %24 = vector.shape_cast %23 : vector<2x1x32xf32> to vector<2x32xf32>
    %c0_10 = arith.constant 0 : index
    %c0_11 = arith.constant 0 : index
    %25 = vector.load %arg5[%c0_10, %c0_11] : memref<2x32xf32, #tpu.memory_space<vmem>>, vector<2x32xf32>
    tpu.vector_store %arg5[%c0_10, %c0_11], %24 {strides = array<i32>} : memref<2x32xf32, #tpu.memory_space<vmem>>, vector<2x32xf32>,
    %c0_12 = arith.constant 0 : index
    %c0_13 = arith.constant 0 : index
    %26 = vector.load %arg6[%c0_12, %c0_13] : memref<2x8xf32, #tpu.memory_space<vmem>>, vector<2x8xf32>
    tpu.vector_store %arg6[%c0_12, %c0_13], %21 {strides = array<i32>} : memref<2x8xf32, #tpu.memory_space<vmem>>, vector<2x8xf32>,
    return
  }
  func.func @transform_0(%arg0: i32) -> (i32, i32, i32) {
    %c0_i32 = arith.constant 0 : i32
    %c0_i32_0 = arith.constant 0 : i32
    %c0_i32_1 = arith.constant 0 : i32
    return %arg0, %c0_i32, %c0_i32_0 : i32, i32, i32
  }
  func.func @transform_1(%arg0: i32) -> (i32, i32) {
    %c0_i32 = arith.constant 0 : i32
    %c0_i32_0 = arith.constant 0 : i32
    %c0_i32_1 = arith.constant 0 : i32
    return %c0_i32, %c0_i32_0 : i32, i32
  }
  func.func @transform_2(%arg0: i32) -> i32 {
    %c0_i32 = arith.constant 0 : i32
    %c0_i32_0 = arith.constant 0 : i32
    return %c0_i32 : i32
  }
  func.func @transform_3(%arg0: i32) -> (i32, i32) {
    %c0_i32 = arith.constant 0 : i32
    %c0_i32_0 = arith.constant 0 : i32
    return %arg0, %c0_i32 : i32, i32
  }
  func.func @transform_4(%arg0: i32) -> (i32, i32) {
    %c0_i32 = arith.constant 0 : i32
    %c0_i32_0 = arith.constant 0 : i32
    return %arg0, %c0_i32 : i32, i32
  }
  func.func @transform_5(%arg0: i32) -> (i32, i32) {
    %c0_i32 = arith.constant 0 : i32
    %c0_i32_0 = arith.constant 0 : i32
    return %arg0, %c0_i32 : i32, i32
  }
}

</mosaic_0001>

<llo_original>
// kernel: tpu_custom_call.1
$region0: #{tpu_custom_call.1}
  #allocation0 [shape = 'u32[]', space=smem, size = 0x4, offset = 0x4, fixed_abs, tag = 'smem constant byte address 0x4 - core index']
  #allocation1 [shape = 'u32[72,128]{1,0:T(1,128)}', space=vmem, size = 0x9000, scoped, tag = 'internal scratch']
  #allocation2 [shape = 'f32[1]{0:T(128)S(6)}', space=smem, size = 0x200, scoped, tag = 'scoped memory for tpu_custom_call.1']
  %s0 = inlined_call_operand.hbm [shape: f32[2,8,32], index: 0, kind: input, shape index: {}]
  %s1 = inlined_call_operand.vmem [shape: f32[1,32], index: 1, kind: input, shape index: {}]
  %s2 = inlined_call_operand.<no memory space> [shape: f32[1], index: 2, kind: input, shape index: {}]
  %s3 = inlined_call_operand.vmem [shape: f32[2,8], index: 3, kind: input, shape index: {}]
  %s4 = inlined_call_operand.hbm [shape: f32[2,32], index: 4, kind: output, shape index: {0}]
  %s5 = inlined_call_operand.hbm [shape: f32[2,8], index: 5, kind: output, shape index: {1}]
  %6 = xla_tuple %s4, %s5
  %s7 = sld [smem:[#allocation0]]
  $region38: #{tpu_custom_call.1} parent=0
    _
  %s9 = ssub.s32 1, %s7
  %s10 = scalar_select 0, %s9, %s7
  %11 = sst [smem:[#allocation2]] %s2
  $region1: #{tpu_custom_call.1} parent=0
    #allocation3 [shape = 'u8[8192]{0}', space=vmem, size = 0x2000, scoped, tag = 'input window, operand 0, single buffered']
    #allocation4 [shape = 's32[1]{0}', space=sflag, size = 0x4, scoped, tag = 'scoped memory for tpu_custom_call.1']
    #allocation5 [shape = 's32[1]{0}', space=sflag, size = 0x4, scoped, tag = 'scoped memory for tpu_custom_call.1']
    #allocation6 [shape = 'u8[1024]{0}', space=vmem, size = 0x400, scoped, tag = 'output window, operand 0, single buffered']
    #allocation7 [shape = 'u8[1024]{0}', space=vmem, size = 0x400, scoped, tag = 'output window, operand 1, single buffered']
    #allocation8 [shape = 's32[1]{0}', space=sflag, size = 0x4, scoped, tag = 'scoped memory for tpu_custom_call.1']
    %12 = vsyncpa [#allocation4], 0
    %13 = vsyncpa [#allocation5], 0
    %14 = vsyncpa [#allocation8], 0
    // Predicated region
    $region2: #{tpu_custom_call.1} parent=1 // pred_check
      _
    $region3: #{tpu_custom_call.1} parent=1 // pred_check_branch
      %16 = sbr.rel (0) target = $region5
    $region4: #{tpu_custom_call.1} parent=1 // pred_region
      %18 = vsyncadd [#allocation4], 0
      %s19 = sshll.u32 %s0, 4
      %s20 = int_to_ptr.hbm [resolvable:$true] %s19
      %s21 = sshll.u32 [#allocation3], 4
      %s22 = int_to_ptr.vmem [resolvable:$true] %s21
      %27 = dma.hbm_to_vmem [thread:$0]  %s20, 256, %s22, [#allocation4], 128, 128, 8
    $region5: #{tpu_custom_call.1} parent=1 // pred_fallthru
      _
    // Predicated region
    $region6: #{tpu_custom_call.1} parent=1 // pred_check
      _
    $region7: #{tpu_custom_call.1} parent=1 // pred_check_branch
      %29 = sbr.rel (0) target = $region9
    $region8: #{tpu_custom_call.1} parent=1 // pred_region
      _
    $region9: #{tpu_custom_call.1} parent=1 // pred_fallthru
      _
    // Predicated region
    $region10: #{tpu_custom_call.1} parent=1 // pred_check
      _
    $region11: #{tpu_custom_call.1} parent=1 // pred_check_branch
      %31 = sbr.rel (0) target = $region13
    $region12: #{tpu_custom_call.1} parent=1 // pred_region
      _
    $region13: #{tpu_custom_call.1} parent=1 // pred_fallthru
      _
    // Predicated region
    $region14: #{tpu_custom_call.1} parent=1 // pred_check
      _
    $region15: #{tpu_custom_call.1} parent=1 // pred_check_branch
      %33 = sbr.rel (0) target = $region17
    $region16: #{tpu_custom_call.1} parent=1 // pred_region
      _
    $region17: #{tpu_custom_call.1} parent=1 // pred_fallthru
      _
    // Predicated region
    $region18: #{tpu_custom_call.1} parent=1 // pred_check
      _
    $region19: #{tpu_custom_call.1} parent=1 // pred_check_branch
      %35 = sbr.rel (0) target = $region21
    $region20: #{tpu_custom_call.1} parent=1 // pred_region
      %37 = dma.done [#allocation4], 256
    $region21: #{tpu_custom_call.1} parent=1 // pred_fallthru
      _
    %v38 = vld [vmem:[#allocation3] sm:$0xff]
    %v39 = vld [vmem:[#allocation3 + $0x8] sm:$0xff]
    %v40 = vld [vmem:[%s1] sm:$0x1]
    %s41 = sld [smem:[#allocation2]]
    %v42 = vld [vmem:[%s3] sm:$0x3]
    %v44 = vperm.slane %v40, 0
    %v46 = vmul.f32 %v38, %v44
    %vm47 = vcmask 261120
    %v48 = vsel %vm47, %v46, 0.0
    %49 = vadd.xlane.f32.xlu0 %v48
    %v50 = vpop.xlane.xlu0 %49
    %v51 = vmul.f32 %v39, %v44
    %v52 = vsel %vm47, %v51, 0.0
    %53 = vadd.xlane.f32.xlu0 %v52
    %v54 = vpop.xlane.xlu0 %53
    %v55 = vstv %s41
    %v56 = vadd.f32 %v50, %v55
    %v57 = vadd.f32 %v54, %v55
    %60 = vset.pattern.permute.xlu0 0
    %61 = vperm.xlu0 %60, %v56
    %v62 = vpop.permute.xlu0 %61
    %63 = vset.pattern.permute.xlu0 0
    %64 = vperm.xlu0 %63, %v57
    %v65 = vpop.permute.xlu0 %64
    %v66 = vlaneseq
    %v67 = vand.u32 %v66, 127
    %v68 = vperm.slane %v62, %v67
    %v69 = vperm.slane %v65, %v67
    %vm70 = vcmask 1041409
    %v71 = vsel %vm70, %v69, %v68
    %v73 = vmul.f32 %v42, %v71
    %vm74 = vcmask 58368
    %v75 = vsel %vm74, %v73, -inf
    %76 = vmax.xlane.f32.xlu0 %v75
    %v77 = vpop.xlane.xlu0 %76
    %v78 = vsub.f32 %v73, %v77
    %v79 = vmul.f32 %v78, 1.442695
    %v80 = vpow.pop %v79
    %v81 = vsel %vm74, %v80, 0.0
    %82 = vadd.xlane.f32.xlu0 %v81
    %v83 = vpop.xlane.xlu0 %82
    %v84 = vrcp.pop %v83
    %v85 = vmul.f32 %v83, %v84
    %v86 = vsub.f32 1.0, %v85
    %v87 = vmul.f32 %v84, %v86
    %v88 = vadd.f32 %v84, %v87
    %vm89 = vweird.f32 %v83
    %vm90 = vweird.f32 %v84
    %vm91 = vmor %vm89, %vm90
    %v92 = vsel %vm91, %v84, %v88
    %v93 = vand.u32 2147483647, %v83
    %vm94 = vcmp.eq.f32.partialorder %v93, 8.507059e+37
    %v95 = vand.u32 %v83, 2147483648
    %v96 = vor.u32 1.1754944e-38, %v95
    %v97 = vsel %vm94, %v96, %v92
    %v98 = vmul.f32 %v80, %v97
    %v100 = vrot.slane %v98, 1
    %vm101 = vcmask 64512
    %v102 = vsel %vm101, %v98, 0
    %104 = vmatpush.msra.mxu0 0.0
    %105 = vmatpush.msra.mxu0 0.0
    %106 = vmatpush.msra.mxu0 0.0
    %107 = vmatpush.msra.mxu0 0.0
    %108 = vmatpush.msra.mxu0 0.0
    %109 = vmatpush.msra.mxu0 0.0
    %110 = vmatpush.msra.mxu0 0.0
    %111 = vmatpush.msra.mxu0 0.0
    %112 = vmatpush.msra.mxu0 0.0
    %113 = vmatpush.msra.mxu0 0.0
    %114 = vmatpush.msra.mxu0 0.0
    %115 = vmatpush.msra.mxu0 0.0
    %116 = vmatpush.msra.mxu0 0.0
    %117 = vmatpush.msra.mxu0 0.0
    %118 = vmatpush.msra.mxu0 0.0
    %119 = vmatpush.msra.mxu0 %v38
    %120 = vmatmul.f32.gmra.mxu0 %v102
    %v121 = vpop.f32.mrf.mxu0
    %v122 = vadd.f32 0.0, %v121
    %123 = vdwg.mxu0
    %v124 = vsel %vm101, %v100, 0
    %126 = vmatpush.msra.mxu0 0.0
    %127 = vmatpush.msra.mxu0 0.0
    %128 = vmatpush.msra.mxu0 0.0
    %129 = vmatpush.msra.mxu0 0.0
    %130 = vmatpush.msra.mxu0 0.0
    %131 = vmatpush.msra.mxu0 0.0
    %132 = vmatpush.msra.mxu0 0.0
    %133 = vmatpush.msra.mxu0 0.0
    %134 = vmatpush.msra.mxu0 0.0
    %135 = vmatpush.msra.mxu0 0.0
    %136 = vmatpush.msra.mxu0 0.0
    %137 = vmatpush.msra.mxu0 0.0
    %138 = vmatpush.msra.mxu0 0.0
    %139 = vmatpush.msra.mxu0 0.0
    %140 = vmatpush.msra.mxu0 0.0
    %141 = vmatpush.msra.mxu0 %v39
    %142 = vmatmul.f32.gmra.mxu0 %v124
    %v143 = vpop.f32.mrf.mxu0
    %v144 = vadd.f32 0.0, %v143
    %145 = vdwg.mxu0
    %v148 = vrot.slane %v144, 7
    %v149 = vsel %vm70, %v148, %v122
    %vm151 = vcmask 254976
    %152 = vst.msk [vmem:[#allocation6] sm:$0x3] %vm151, %v149
    %153 = vst.msk [vmem:[#allocation7] sm:$0x3] %vm74, %v98
    // Predicated region
    $region22: #{tpu_custom_call.1} parent=1 // pred_check
      _
    $region23: #{tpu_custom_call.1} parent=1 // pred_check_branch
      %155 = sbr.rel (0) target = $region25
    $region24: #{tpu_custom_call.1} parent=1 // pred_region
      %157 = vsyncadd [#allocation5], 0
      %s159 = sshll.u32 [#allocation6], 4
      %s160 = int_to_ptr.vmem [resolvable:$true] %s159
      %s161 = sshll.u32 %s4, 4
      %s162 = int_to_ptr.hbm [resolvable:$true] %s161
      %164 = dma.vmem_to_hbm [thread:$0]  %s160, 32, %s162, [#allocation5]
    $region25: #{tpu_custom_call.1} parent=1 // pred_fallthru
      _
    // Predicated region
    $region26: #{tpu_custom_call.1} parent=1 // pred_check
      _
    $region27: #{tpu_custom_call.1} parent=1 // pred_check_branch
      %166 = sbr.rel (0) target = $region29
    $region28: #{tpu_custom_call.1} parent=1 // pred_region
      %168 = vsyncadd [#allocation8], 0
      %s170 = sshll.u32 [#allocation7], 4
      %s171 = int_to_ptr.vmem [resolvable:$true] %s170
      %s172 = sshll.u32 %s5, 4
      %s173 = int_to_ptr.hbm [resolvable:$true] %s172
      %175 = dma.vmem_to_hbm [thread:$0]  %s171, 32, %s173, [#allocation8]
    $region29: #{tpu_custom_call.1} parent=1 // pred_fallthru
      _
    // Predicated region
    $region30: #{tpu_custom_call.1} parent=1 // pred_check
      _
    $region31: #{tpu_custom_call.1} parent=1 // pred_check_branch
      %177 = sbr.rel (0) target = $region33
    $region32: #{tpu_custom_call.1} parent=1 // pred_region
      %179 = dma.done [#allocation5], 32
    $region33: #{tpu_custom_call.1} parent=1 // pred_fallthru
      _
    // Predicated region
    $region34: #{tpu_custom_call.1} parent=1 // pred_check
      _
    $region35: #{tpu_custom_call.1} parent=1 // pred_check_branch
      %181 = sbr.rel (0) target = $region37
    $region36: #{tpu_custom_call.1} parent=1 // pred_region
      %183 = dma.done [#allocation8], 32
    $region37: #{tpu_custom_call.1} parent=1 // pred_fallthru
      _
    %184 = vsyncpa [#allocation4], 1
    %185 = vsyncpa [#allocation5], 1
    %186 = vsyncpa [#allocation8], 1

</llo_original>
